<compile_context>
chip_gen: v5e
topology: v5e:2x2
jax: 0.10.0
libtpu: 0.0.40
codegen_flags: <defaults>
</compile_context>

<pallas_src>
import jax
import jax.numpy as jnp
from jax import lax
from jax.experimental import pallas as pl
from jax.experimental.pallas import tpu as pltpu

LN_EPS = 1e-5
_INV_SQRT2 = 0.7071067811865476


def _head_transform_kernel(x_ref, w_ref, b_ref, gamma_ref, beta_ref, o_ref):
    # Dense on the MXU in the operands' native dtype; accumulate in f32.
    h = jnp.dot(x_ref[...], w_ref[...], preferred_element_type=jnp.float32)
    h = h + b_ref[...]  # bias already f32, (1, H) broadcast

    # Exact GELU (matches torch.nn.GELU() default, erf form).
    h = 0.5 * h * (1.0 + lax.erf(h * jnp.float32(_INV_SQRT2)))

    # LayerNorm over the hidden (last) axis — centered two-pass statistics
    # in f32 (matches PyTorch LayerNorm numerics more closely than E[x^2]-E[x]^2).
    inv_h = jnp.float32(1.0 / h.shape[-1])
    mean = jnp.sum(h, axis=-1, keepdims=True) * inv_h
    c = h - mean
    var = jnp.sum(c * c, axis=-1, keepdims=True) * inv_h
    y = c * lax.rsqrt(var + jnp.float32(LN_EPS))
    y = y * gamma_ref[...] + beta_ref[...]

    o_ref[...] = y.astype(o_ref.dtype)


def _round_up(x, m):
    return ((x + m - 1) // m) * m


def _vmem_capacity_bytes():
    try:
        info = pltpu.get_tpu_info()
        cap = getattr(info, "vmem_capacity_bytes", None)
        if cap:
            return int(cap)
    except Exception:
        pass
    return 128 * 1024 * 1024  # v5e/v6e physical VMEM; v7x query normally succeeds


def bert_prediction_head_transform(x, w, b, gamma, beta, *,
                                   block_rows=1024, matmul_dtype=None):
    """y = LayerNorm(GELU(x @ W + b)) along the last axis.

    x: (B, S, H); w: (H, H) with (in, out) layout; b/gamma/beta: (H,).
    matmul_dtype: optional dtype (e.g. jnp.bfloat16) to feed the MXU with;
                  None = use the (promoted) native dtype of x and W.
                  Accumulation / GELU / LayerNorm always run in f32.
    """
    B, S, H = x.shape
    N = B * S
    out_dtype = x.dtype

    # Flatten tokens (metadata-only reshape; no HBM pass).
    x_flat = x.reshape(N, H)

    # Make x / W dtypes match explicitly so the MXU is fed what we account for.
    mm_dtype = matmul_dtype if matmul_dtype is not None else jnp.promote_types(
        x.dtype, w.dtype)
    x_flat = x_flat.astype(mm_dtype)
    w = w.astype(mm_dtype)

    # Params resident in compute dtype (f32) — no per-step conversion in-kernel.
    b2 = b.reshape(1, H).astype(jnp.float32)
    g2 = gamma.reshape(1, H).astype(jnp.float32)
    be2 = beta.reshape(1, H).astype(jnp.float32)

    # Row-tile sizing:
    #  * sublane alignment: bf16 packs 2 rows/sublane -> 16; f32 -> 8
    #  * large default tile (1024 rows) amortizes per-step pipeline overhead
    #  * pl.cdiv grid + Pallas-masked ragged last tile => no host pad/slice
    #  * keep >= 2 grid steps when possible so both v7x TensorCores get work.
    row_align = 16 if mm_dtype == jnp.bfloat16 else 8
    tm = min(_round_up(block_rows, row_align), _round_up(N, row_align))
    if N > row_align and pl.cdiv(N, tm) < 2:
        tm = _round_up(pl.cdiv(N, 2), row_align)
    grid = (pl.cdiv(N, tm),)

    isz_x = jnp.dtype(mm_dtype).itemsize
    isz_o = jnp.dtype(out_dtype).itemsize

    # VMEM budget: double-buffered x/out tiles, single resident W + params,
    # f32 temporaries for the body, 2x headroom; capped at 0.8x physical VMEM
    # (generation-aware: ~51 MiB on v7x, ~102 MiB on v5e/v6e).
    need = (2 * tm * H * isz_x        # x tiles (double-buffered)
            + 2 * tm * H * isz_o      # output tiles (double-buffered)
            + H * H * isz_x           # resident weight (Buffered(1))
            + 3 * H * 4               # f32 bias / gamma / beta
            + 4 * tm * H * 4)         # f32 temporaries in the body
    vmem_cap = _vmem_capacity_bytes()
    vmem_limit = int(min(max(2 * need, 32 * 1024 * 1024), int(0.8 * vmem_cap)))

    cost = pl.CostEstimate(
        flops=2 * N * H * H,
        transcendentals=N * H,                          # erf
        bytes_accessed=(N * H * (isz_x + isz_o)         # x read + y write
                        + H * H * isz_x                 # weight
                        + 3 * H * 4),                   # params
    )

    resident = dict(pipeline_mode=pl.Buffered(1))       # constant-index inputs

    out_flat = pl.pallas_call(
        _head_transform_kernel,
        out_shape=jax.ShapeDtypeStruct((N, H), out_dtype),
        grid_spec=pltpu.PrefetchScalarGridSpec(
            num_scalar_prefetch=0,
            grid=grid,
            in_specs=[
                pl.BlockSpec((tm, H), lambda i: (i, 0)),              # x rows
                pl.BlockSpec((H, H), lambda i: (0, 0), **resident),   # W (resident)
                pl.BlockSpec((1, H), lambda i: (0, 0), **resident),   # b
                pl.BlockSpec((1, H), lambda i: (0, 0), **resident),   # gamma
                pl.BlockSpec((1, H), lambda i: (0, 0), **resident),   # beta
            ],
            out_specs=pl.BlockSpec((tm, H), lambda i: (i, 0)),
        ),
        compiler_params=pltpu.CompilerParams(
            dimension_semantics=("parallel",),
            vmem_limit_bytes=vmem_limit,
        ),
        cost_estimate=cost,
    )(x_flat, w, b2, g2, be2)

    return out_flat.reshape(B, S, H)


def _reference(x, w, b, gamma, beta):
    h = jnp.einsum("bsh,ho->bso", x, w) + b
    h = 0.5 * h * (1.0 + lax.erf(h / jnp.sqrt(2.0)))
    mean = jnp.mean(h, axis=-1, keepdims=True)
    var = jnp.mean((h - mean) ** 2, axis=-1, keepdims=True)
    return (h - mean) * lax.rsqrt(var + LN_EPS) * gamma + beta


if __name__ == "__main__":
    key = jax.random.PRNGKey(0)
    B, S, H = 2, 8, 32  # small shapes consistent with a BERT-style head
    k_x, k_w, k_b, k_g, k_be = jax.random.split(key, 5)

    x = jax.random.normal(k_x, (B, S, H), dtype=jnp.float32)
    # deterministic parameter init (synthetic, not a checkpoint load)
    w = jax.random.normal(k_w, (H, H), dtype=jnp.float32) * (1.0 / jnp.sqrt(H))
    b = jax.random.normal(k_b, (H,), dtype=jnp.float32) * 0.02
    gamma = 1.0 + 0.05 * jax.random.normal(k_g, (H,), dtype=jnp.float32)
    beta = 0.05 * jax.random.normal(k_be, (H,), dtype=jnp.float32)

    ref = _reference(x, w, b, gamma, beta)

    # Native f32 path (exact module semantics).
    out = bert_prediction_head_transform(x, w, b, gamma, beta)
    out = jax.block_until_ready(out)
    assert out.shape == (B, S, H)
    assert jnp.allclose(out, ref, atol=1e-4, rtol=1e-4)

    # bf16 MXU-feed fast path (the recommended config on v5e/v6e/v7x);
    # compared against the f32 reference at bf16-appropriate tolerance.
    out_bf16 = bert_prediction_head_transform(
        x.astype(jnp.bfloat16), w.astype(jnp.bfloat16), b, gamma, beta)
    out_bf16 = jax.block_until_ready(out_bf16)
    assert out_bf16.shape == (B, S, H)
    assert jnp.allclose(out_bf16.astype(jnp.float32), ref, atol=1e-1, rtol=1e-1)

    print("KERNEL_OK")
</pallas_src>

<mosaic_0001>
module attributes {stable_mosaic.version = 11 : i64} {
  func.func @_head_transform_kernel(%arg0: i32, %arg1: memref<8x32xf32, #tpu.memory_space<vmem>>, %arg2: memref<32x32xf32, #tpu.memory_space<vmem>>, %arg3: memref<1x32xf32, #tpu.memory_space<vmem>>, %arg4: memref<1x32xf32, #tpu.memory_space<vmem>>, %arg5: memref<1x32xf32, #tpu.memory_space<vmem>>, %arg6: memref<8x32xf32, #tpu.memory_space<vmem>>) attributes {dimension_semantics = [#tpu.dimension_semantics<parallel>], iteration_bounds = array<i64: 2>, scalar_prefetch = 0 : i64, scratch_operands = 0 : i64, tpu.core_type = #tpu.core_type<tc>, window_params = [{transform_indices = @transform_0, window_bounds = array<i64: 8, 32>}, {pipeline_mode = #tpu.pipeline_mode<synchronous>, transform_indices = @transform_1, window_bounds = array<i64: 32, 32>}, {pipeline_mode = #tpu.pipeline_mode<synchronous>, transform_indices = @transform_2, window_bounds = array<i64: 1, 32>}, {pipeline_mode = #tpu.pipeline_mode<synchronous>, transform_indices = @transform_3, window_bounds = array<i64: 1, 32>}, {pipeline_mode = #tpu.pipeline_mode<synchronous>, transform_indices = @transform_4, window_bounds = array<i64: 1, 32>}, {transform_indices = @transform_5, window_bounds = array<i64: 8, 32>}]} {
    %c0 = arith.constant 0 : index
    %c0_0 = arith.constant 0 : index
    %0 = vector.load %arg1[%c0, %c0_0] : memref<8x32xf32, #tpu.memory_space<vmem>>, vector<8x32xf32>
    %c0_1 = arith.constant 0 : index
    %c0_2 = arith.constant 0 : index
    %1 = vector.load %arg2[%c0_1, %c0_2] : memref<32x32xf32, #tpu.memory_space<vmem>>, vector<32x32xf32>
    %cst = arith.constant dense<0.000000e+00> : vector<8x32xf32>
    %2 = tpu.matmul %0, %1, %cst {dimension_numbers = #tpu.dot_dimension_numbers<[1], [0], [0], [1], [0, 0, 1, 1], [], []>} : vector<8x32xf32>, vector<32x32xf32>, vector<8x32xf32> -> vector<8x32xf32>
    %c0_3 = arith.constant 0 : index
    %c0_4 = arith.constant 0 : index
    %3 = vector.load %arg3[%c0_3, %c0_4] : memref<1x32xf32, #tpu.memory_space<vmem>>, vector<1x32xf32>
    %4 = vector.broadcast %3 : vector<1x32xf32> to vector<8x32xf32>
    %5 = arith.addf %2, %4 : vector<8x32xf32>
    %cst_5 = arith.constant 5.000000e-01 : f32
    %6 = vector.broadcast %cst_5 : f32 to vector<8x32xf32>
    %7 = arith.mulf %6, %5 : vector<8x32xf32>
    %cst_6 = arith.constant 0.707106769 : f32
    %8 = vector.broadcast %cst_6 : f32 to vector<8x32xf32>
    %9 = arith.mulf %5, %8 : vector<8x32xf32>
    %10 = math.erf %9 : vector<8x32xf32>
    %cst_7 = arith.constant 1.000000e+00 : f32
    %11 = vector.broadcast %cst_7 : f32 to vector<8x32xf32>
    %12 = arith.addf %11, %10 : vector<8x32xf32>
    %13 = arith.mulf %7, %12 : vector<8x32xf32>
    %cst_8 = arith.constant dense<0.000000e+00> : vector<8xf32>
    %14 = vector.multi_reduction <add>, %13, %cst_8 [1] : vector<8x32xf32> to vector<8xf32>
    %15 = vector.shape_cast %14 : vector<8xf32> to vector<8x1xf32>
    %cst_9 = arith.constant 3.125000e-02 : f32
    %16 = vector.broadcast %cst_9 : f32 to vector<8x1xf32>
    %17 = arith.mulf %15, %16 : vector<8x1xf32>
    %18 = vector.broadcast %17 : vector<8x1xf32> to vector<8x32xf32>
    %19 = arith.subf %13, %18 : vector<8x32xf32>
    %20 = arith.mulf %19, %19 : vector<8x32xf32>
    %cst_10 = arith.constant dense<0.000000e+00> : vector<8xf32>
    %21 = vector.multi_reduction <add>, %20, %cst_10 [1] : vector<8x32xf32> to vector<8xf32>
    %22 = vector.shape_cast %21 : vector<8xf32> to vector<8x1xf32>
    %cst_11 = arith.constant 3.125000e-02 : f32
    %23 = vector.broadcast %cst_11 : f32 to vector<8x1xf32>
    %24 = arith.mulf %22, %23 : vector<8x1xf32>
    %cst_12 = arith.constant 9.99999974E-6 : f32
    %25 = vector.broadcast %cst_12 : f32 to vector<8x1xf32>
    %26 = arith.addf %24, %25 : vector<8x1xf32>
    %27 = math.rsqrt %26 : vector<8x1xf32>
    %28 = vector.broadcast %27 : vector<8x1xf32> to vector<8x32xf32>
    %29 = arith.mulf %19, %28 : vector<8x32xf32>
    %c0_13 = arith.constant 0 : index
    %c0_14 = arith.constant 0 : index
    %30 = vector.load %arg4[%c0_13, %c0_14] : memref<1x32xf32, #tpu.memory_space<vmem>>, vector<1x32xf32>
    %31 = vector.broadcast %30 : vector<1x32xf32> to vector<8x32xf32>
    %32 = arith.mulf %29, %31 : vector<8x32xf32>
    %c0_15 = arith.constant 0 : index
    %c0_16 = arith.constant 0 : index
    %33 = vector.load %arg5[%c0_15, %c0_16] : memref<1x32xf32, #tpu.memory_space<vmem>>, vector<1x32xf32>
    %34 = vector.broadcast %33 : vector<1x32xf32> to vector<8x32xf32>
    %35 = arith.addf %32, %34 : vector<8x32xf32>
    %c0_17 = arith.constant 0 : index
    %c0_18 = arith.constant 0 : index
    %36 = vector.load %arg6[%c0_17, %c0_18] : memref<8x32xf32, #tpu.memory_space<vmem>>, vector<8x32xf32>
    tpu.vector_store %arg6[%c0_17, %c0_18], %35 {strides = array<i32>} : memref<8x32xf32, #tpu.memory_space<vmem>>, vector<8x32xf32>,
    return
  }
  func.func @transform_0(%arg0: i32) -> (i32, i32) {
    %c0_i32 = arith.constant 0 : i32
    %c0_i32_0 = arith.constant 0 : i32
    return %arg0, %c0_i32 : i32, i32
  }
  func.func @transform_1(%arg0: i32) -> (i32, i32) {
    %c0_i32 = arith.constant 0 : i32
    %c0_i32_0 = arith.constant 0 : i32
    %c0_i32_1 = arith.constant 0 : i32
    return %c0_i32, %c0_i32_0 : i32, i32
  }
  func.func @transform_2(%arg0: i32) -> (i32, i32) {
    %c0_i32 = arith.constant 0 : i32
    %c0_i32_0 = arith.constant 0 : i32
    %c0_i32_1 = arith.constant 0 : i32
    return %c0_i32, %c0_i32_0 : i32, i32
  }
  func.func @transform_3(%arg0: i32) -> (i32, i32) {
    %c0_i32 = arith.constant 0 : i32
    %c0_i32_0 = arith.constant 0 : i32
    %c0_i32_1 = arith.constant 0 : i32
    return %c0_i32, %c0_i32_0 : i32, i32
  }
  func.func @transform_4(%arg0: i32) -> (i32, i32) {
    %c0_i32 = arith.constant 0 : i32
    %c0_i32_0 = arith.constant 0 : i32
    %c0_i32_1 = arith.constant 0 : i32
    return %c0_i32, %c0_i32_0 : i32, i32
  }
  func.func @transform_5(%arg0: i32) -> (i32, i32) {
    %c0_i32 = arith.constant 0 : i32
    %c0_i32_0 = arith.constant 0 : i32
    return %arg0, %c0_i32 : i32, i32
  }
}

</mosaic_0001>

<llo_original>
// kernel: tpu_custom_call.1
$region0: #{tpu_custom_call.1}
  #allocation0 [shape = 'u32[]', space=smem, size = 0x4, offset = 0x4, fixed_abs, tag = 'smem constant byte address 0x4 - core index']
  #allocation1 [shape = 'u32[72,128]{1,0:T(1,128)}', space=vmem, size = 0x9000, scoped, tag = 'internal scratch']
  %s0 = inlined_call_operand.hbm [shape: f32[16,32], index: 0, kind: input, shape index: {}]
  %s1 = inlined_call_operand.hbm [shape: f32[32,32], index: 1, kind: input, shape index: {}]
  %s2 = inlined_call_operand.vmem [shape: f32[1,32], index: 2, kind: input, shape index: {}]
  %s3 = inlined_call_operand.vmem [shape: f32[1,32], index: 3, kind: input, shape index: {}]
  %s4 = inlined_call_operand.vmem [shape: f32[1,32], index: 4, kind: input, shape index: {}]
  %s5 = inlined_call_operand.hbm [shape: f32[16,32], index: 5, kind: output, shape index: {}]
  %s6 = sld [smem:[#allocation0]]
  $region61: #{tpu_custom_call.1} parent=0
    _
  %s8 = ssub.s32 1, %s6
  %s9 = scalar_select 0, %s8, %s6
  $region1: #{tpu_custom_call.1} parent=0
    #allocation2 [shape = 'u8[8192]{0}', space=vmem, size = 0x2000, scoped, tag = 'input window, operand 0']
    #allocation3 [shape = 's32[2]{0}', space=sflag, size = 0x8, scoped, tag = 'scoped memory for tpu_custom_call.1']
    #allocation4 [shape = 's32[2]{0}', space=sflag, size = 0x8, scoped, tag = 'scoped memory for tpu_custom_call.1']
    #allocation5 [shape = 'u8[16384]{0}', space=vmem, size = 0x4000, scoped, tag = 'input window, operand 1, single buffered']
    #allocation6 [shape = 's32[1]{0}', space=sflag, size = 0x4, scoped, tag = 'scoped memory for tpu_custom_call.1']
    #allocation7 [shape = 'u8[8192]{0}', space=vmem, size = 0x2000, scoped, tag = 'output window, operand 0']
    %10 = vsyncpa [#allocation3], 0
    %s11 = scalar_lea.sflag [#allocation3], 1
    %12 = vsyncpa %s11, 0
    %13 = vsyncpa [#allocation6], 0
    %14 = vsyncpa [#allocation4], 0
    %s15 = scalar_lea.sflag [#allocation4], 1
    %16 = vsyncpa %s15, 0
    loop: start=0, step=1, limit=4
    $region2: #{tpu_custom_call.1} parent=1 // loop_pre_header
      _
    $region3: #{tpu_custom_call.1} parent=1 // loop_header
      %s18 = sphi 0, %s22
      %p19 = scmp.ge.s32.totalorder %s18, 4
      %s28 = sphi 0, %s30
      %s31 = sphi 0, %s28
      %s32 = sphi 0, %s31
      %s48 = sphi 0, %s32
      %s52 = sphi 0, %s52
      %s54 = sphi 0, %s52
      %s55 = sphi 0, %s54
      %s69 = sphi 0, %s55
      %s73 = sphi 0, %s73
      %s75 = sphi 0, %s73
      %s76 = sphi 0, %s75
      %s90 = sphi 0, %s76
      %s94 = sphi 0, %s94
      %s96 = sphi 0, %s94
      %s97 = sphi 0, %s96
      %s111 = sphi 0, %s97
      %s115 = sphi 0, %s115
      %s117 = sphi 0, %s115
      %s118 = sphi 0, %s117
      %s132 = sphi 0, %s118
      %s138 = sphi 0, %s140
      %s141 = sphi 0, %s138
      %s142 = sphi 0, %s141
      %s158 = sphi 0, %s142
    $region4: #{tpu_custom_call.1} parent=1 // loop_header_branch
      %21 = sbr.rel (%p19) target = $region8
    $region5: #{tpu_custom_call.1} parent=1 // loop_body
      %s23 = ssub.s32 %s18, 1
      %s24 = ssub.s32 %s18, 2
      %s25 = sadd.s32 %s18, 1
      %s26 = ssub.s32 %s18, %s25
      %p27 = scmp.eq.s32.totalorder %s26, 0
      %s29 = sadd.s32 %s28, 1
      %s30 = scalar_select %p27, %s28, %s29
      %p33 = pneg %p27
      %p34 = scmp.eq.s32.totalorder %s18, 1
      %p35 = por %p33, %p34
      %p36 = scmp.ne.s32.totalorder %s28, %s31
      %p37 = scmp.eq.s32.totalorder %s18, 0
      %p38 = por %p36, %p37
      %p39 = scmp.ne.s32.totalorder %s28, %s31
      %p40 = scmp.eq.s32.totalorder %s23, 1
      %p41 = por %p39, %p40
      %p42 = scmp.ne.s32.totalorder %s31, %s32
      %p43 = scmp.eq.s32.totalorder %s23, 0
      %p44 = por %p42, %p43
      %p45 = scmp.ne.s32.totalorder %s31, %s32
      %p46 = scmp.eq.s32.totalorder %s24, 1
      %p47 = por %p45, %p46
      %p49 = scmp.ne.s32.totalorder %s32, %s48
      %p50 = scmp.eq.s32.totalorder %s24, 0
      %p51 = por %p49, %p50
      %s53 = sadd.s32 %s52, 1
      %p56 = scmp.eq.s32.totalorder %s18, 1
      %p57 = scmp.ne.s32.totalorder %s52, %s54
      %p58 = scmp.eq.s32.totalorder %s18, 0
      %p59 = por %p57, %p58
      %p60 = scmp.ne.s32.totalorder %s52, %s54
      %p61 = scmp.eq.s32.totalorder %s23, 1
      %p62 = por %p60, %p61
      %p63 = scmp.ne.s32.totalorder %s54, %s55
      %p64 = scmp.eq.s32.totalorder %s23, 0
      %p65 = por %p63, %p64
      %p66 = scmp.ne.s32.totalorder %s54, %s55
      %p67 = scmp.eq.s32.totalorder %s24, 1
      %p68 = por %p66, %p67
      %p70 = scmp.ne.s32.totalorder %s55, %s69
      %p71 = scmp.eq.s32.totalorder %s24, 0
      %p72 = por %p70, %p71
      %s74 = sadd.s32 %s73, 1
      %p77 = scmp.eq.s32.totalorder %s18, 1
      %p78 = scmp.ne.s32.totalorder %s73, %s75
      %p79 = scmp.eq.s32.totalorder %s18, 0
      %p80 = por %p78, %p79
      %p81 = scmp.ne.s32.totalorder %s73, %s75
      %p82 = scmp.eq.s32.totalorder %s23, 1
      %p83 = por %p81, %p82
      %p84 = scmp.ne.s32.totalorder %s75, %s76
      %p85 = scmp.eq.s32.totalorder %s23, 0
      %p86 = por %p84, %p85
      %p87 = scmp.ne.s32.totalorder %s75, %s76
      %p88 = scmp.eq.s32.totalorder %s24, 1
      %p89 = por %p87, %p88
      %p91 = scmp.ne.s32.totalorder %s76, %s90
      %p92 = scmp.eq.s32.totalorder %s24, 0
      %p93 = por %p91, %p92
      %s95 = sadd.s32 %s94, 1
      %p98 = scmp.eq.s32.totalorder %s18, 1
      %p99 = scmp.ne.s32.totalorder %s94, %s96
      %p100 = scmp.eq.s32.totalorder %s18, 0
      %p101 = por %p99, %p100
      %p102 = scmp.ne.s32.totalorder %s94, %s96
      %p103 = scmp.eq.s32.totalorder %s23, 1
      %p104 = por %p102, %p103
      %p105 = scmp.ne.s32.totalorder %s96, %s97
      %p106 = scmp.eq.s32.totalorder %s23, 0
      %p107 = por %p105, %p106
      %p108 = scmp.ne.s32.totalorder %s96, %s97
      %p109 = scmp.eq.s32.totalorder %s24, 1
      %p110 = por %p108, %p109
      %p112 = scmp.ne.s32.totalorder %s97, %s111
      %p113 = scmp.eq.s32.totalorder %s24, 0
      %p114 = por %p112, %p113
      %s116 = sadd.s32 %s115, 1
      %p119 = scmp.eq.s32.totalorder %s18, 1
      %p120 = scmp.ne.s32.totalorder %s115, %s117
      %p121 = scmp.eq.s32.totalorder %s18, 0
      %p122 = por %p120, %p121
      %p123 = scmp.ne.s32.totalorder %s115, %s117
      %p124 = scmp.eq.s32.totalorder %s23, 1
      %p125 = por %p123, %p124
      %p126 = scmp.ne.s32.totalorder %s117, %s118
      %p127 = scmp.eq.s32.totalorder %s23, 0
      %p128 = por %p126, %p127
      %p129 = scmp.ne.s32.totalorder %s117, %s118
      %p130 = scmp.eq.s32.totalorder %s24, 1
      %p131 = por %p129, %p130
      %p133 = scmp.ne.s32.totalorder %s118, %s132
      %p134 = scmp.eq.s32.totalorder %s24, 0
      %p135 = por %p133, %p134
      %s136 = ssub.s32 %s18, %s25
      %p137 = scmp.eq.s32.totalorder %s136, 0
      %s139 = sadd.s32 %s138, 1
      %s140 = scalar_select %p137, %s138, %s139
      %p143 = pneg %p137
      %p144 = scmp.eq.s32.totalorder %s18, 1
      %p145 = por %p143, %p144
      %p146 = scmp.ne.s32.totalorder %s138, %s141
      %p147 = scmp.eq.s32.totalorder %s18, 0
      %p148 = por %p146, %p147
      %p149 = scmp.ne.s32.totalorder %s138, %s141
      %p150 = scmp.eq.s32.totalorder %s23, 1
      %p151 = por %p149, %p150
      %p152 = scmp.ne.s32.totalorder %s141, %s142
      %p153 = scmp.eq.s32.totalorder %s23, 0
      %p154 = por %p152, %p153
      %p155 = scmp.ne.s32.totalorder %s141, %s142
      %p156 = scmp.eq.s32.totalorder %s24, 1
      %p157 = por %p155, %p156
      %p159 = scmp.ne.s32.totalorder %s142, %s158
      %p160 = scmp.eq.s32.totalorder %s24, 0
      %p161 = por %p159, %p160
      %p162 = scmp.le.s32.totalorder 1, %s18
      %p163 = scmp.lt.s32.totalorder %s18, 3
      %p164 = pnand %p162, %p163
      %p165 = pneg %p164
      // Predicated region
      $region9: #{tpu_custom_call.1} parent=5 // pred_check
        _
      $region10: #{tpu_custom_call.1} parent=5 // pred_check_branch
        %167 = sbr.rel (%p164) target = $region12
      $region11: #{tpu_custom_call.1} parent=5 // pred_region
        %s168 = ssub.s32 %s18, 1
        // Predicated region
        $region13: #{tpu_custom_call.1} parent=11 // pred_check
          %p169 = pneg %p65
        $region14: #{tpu_custom_call.1} parent=11 // pred_check_branch
          %171 = sbr.rel (%p169) target = $region16
        $region15: #{tpu_custom_call.1} parent=11 // pred_region
          %173 = vsyncadd [#allocation6], 0
          %s174 = sshll.u32 %s1, 4
          %s175 = int_to_ptr.hbm [resolvable:$true] %s174
          %s176 = sshll.u32 [#allocation5], 4
          %s177 = int_to_ptr.vmem [resolvable:$true] %s176
          %182 = dma.hbm_to_vmem [thread:$0]  %s175, 512, %s177, [#allocation6], 128, 128, 8
        $region16: #{tpu_custom_call.1} parent=11 // pred_fallthru
          _
        // Predicated region
        $region17: #{tpu_custom_call.1} parent=11 // pred_check
          %p183 = pneg %p86
        $region18: #{tpu_custom_call.1} parent=11 // pred_check_branch
          %185 = sbr.rel (%p183) target = $region20
        $region19: #{tpu_custom_call.1} parent=11 // pred_region
          _
        $region20: #{tpu_custom_call.1} parent=11 // pred_fallthru
          _
        // Predicated region
        $region21: #{tpu_custom_call.1} parent=11 // pred_check
          %p186 = pneg %p107
        $region22: #{tpu_custom_call.1} parent=11 // pred_check_branch
          %188 = sbr.rel (%p186) target = $region24
        $region23: #{tpu_custom_call.1} parent=11 // pred_region
          _
        $region24: #{tpu_custom_call.1} parent=11 // pred_fallthru
          _
        // Predicated region
        $region25: #{tpu_custom_call.1} parent=11 // pred_check
          %p189 = pneg %p128
        $region26: #{tpu_custom_call.1} parent=11 // pred_check_branch
          %191 = sbr.rel (%p189) target = $region28
        $region27: #{tpu_custom_call.1} parent=11 // pred_region
          _
        $region28: #{tpu_custom_call.1} parent=11 // pred_fallthru
          _
      $region12: #{tpu_custom_call.1} parent=5 // pred_fallthru
        _
      %p192 = scmp.lt.s32.totalorder %s18, 2
      // Predicated region
      $region29: #{tpu_custom_call.1} parent=5 // pred_check
        %p193 = pneg %p192
      $region30: #{tpu_custom_call.1} parent=5 // pred_check_branch
        %195 = sbr.rel (%p193) target = $region32
      $region31: #{tpu_custom_call.1} parent=5 // pred_region
        // Predicated region
        $region33: #{tpu_custom_call.1} parent=31 // pred_check
          %p196 = pneg %p38
        $region34: #{tpu_custom_call.1} parent=31 // pred_check_branch
          %198 = sbr.rel (%p196) target = $region36
        $region35: #{tpu_custom_call.1} parent=31 // pred_region
          %s199 = sand.u32 %s28, 1
          %s200 = scalar_lea.sflag [#allocation3], %s199
          %s201 = sand.u32 %s28, 1
          %s202 = smul.addr %s201, 8
          %s203 = scalar_lea.vmem [#allocation2], %s202
          %205 = vsyncadd %s200, 0
          %s206 = smul.addr %s18, 8
          %s207 = scalar_lea.hbm %s0, %s206
          %s209 = sshll.u32 %s207, 4
          %s210 = int_to_ptr.hbm [resolvable:$true] %s209
          %s211 = sshll.u32 %s203, 4
          %s212 = int_to_ptr.vmem [resolvable:$true] %s211
          %214 = dma.hbm_to_vmem [thread:$0]  %s210, 128, %s212, %s200
        $region36: #{tpu_custom_call.1} parent=31 // pred_fallthru
          _
      $region32: #{tpu_custom_call.1} parent=5 // pred_fallthru
        _
      %p215 = scmp.le.s32.totalorder 1, %s18
      %p216 = scmp.lt.s32.totalorder %s18, 3
      %p217 = pnand %p215, %p216
      %p218 = pneg %p217
      // Predicated region
      $region37: #{tpu_custom_call.1} parent=5 // pred_check
        _
      $region38: #{tpu_custom_call.1} parent=5 // pred_check_branch
        %220 = sbr.rel (%p217) target = $region40
      $region39: #{tpu_custom_call.1} parent=5 // pred_region
        %s221 = ssub.s32 %s18, 1
        %s222 = sand.u32 %s31, 1
        %s223 = scalar_lea.sflag [#allocation3], %s222
        %s224 = sand.u32 %s31, 1
        %s225 = smul.addr %s224, 8
        %s226 = scalar_lea.vmem [#allocation2], %s225
        // Predicated region
        $region41: #{tpu_custom_call.1} parent=39 // pred_check
          %p227 = pneg %p44
        $region42: #{tpu_custom_call.1} parent=39 // pred_check_branch
          %229 = sbr.rel (%p227) target = $region44
        $region43: #{tpu_custom_call.1} parent=39 // pred_region
          %231 = dma.done %s223, 128
        $region44: #{tpu_custom_call.1} parent=39 // pred_fallthru
          _
        // Predicated region
        $region45: #{tpu_custom_call.1} parent=39 // pred_check
          %p232 = pneg %p65
        $region46: #{tpu_custom_call.1} parent=39 // pred_check_branch
          %234 = sbr.rel (%p232) target = $region48
        $region47: #{tpu_custom_call.1} parent=39 // pred_region
          %236 = dma.done [#allocation6], 512
        $region48: #{tpu_custom_call.1} parent=39 // pred_fallthru
          _
        %s237 = sand.u32 %s31, 1
        %s238 = scalar_lea.sflag [#allocation3], %s237
        %s239 = sand.u32 %s31, 1
        %s240 = smul.addr %s239, 8
        %s241 = scalar_lea.vmem [#allocation2], %s240
        %p242 = pneg %p44
        %p243 = pneg %p41
        %p244 = pneg %p65
        %p245 = pneg %p62
        %p246 = pneg %p86
        %p247 = pneg %p83
        %p248 = pneg %p107
        %p249 = pneg %p104
        %p250 = pneg %p128
        %p251 = pneg %p125
        %p252 = pneg %p154
        %p253 = pneg %p151
        %s254 = sand.u32 %s141, 1
        %s255 = scalar_lea.sflag [#allocation4], %s254
        %s256 = sand.u32 %s141, 1
        %s257 = smul.addr %s256, 8
        %s258 = scalar_lea.vmem [#allocation7], %s257
        %v259 = vld [vmem:[%s226] sm:$0xff]
        %v260 = vld [vmem:[#allocation5] sm:$0xff]
        %v261 = vld [vmem:[#allocation5 + $0x8] sm:$0xff]
        %v262 = vld [vmem:[#allocation5 + $0x10] sm:$0xff]
        %v263 = vld [vmem:[#allocation5 + $0x18] sm:$0xff]
        %v264 = vld [vmem:[%s2] sm:$0x1]
        %v266 = vperm.slane %v264, 0
        %vm268 = vcmask 261120
        %v270 = vsel %vm268, %v259, 0
        %272 = vmatpush.msra.mxu0 0.0
        %273 = vmatpush.msra.mxu0 0.0
        %274 = vmatpush.msra.mxu0 0.0
        %275 = vmatpush.msra.mxu0 0.0
        %276 = vmatpush.msra.mxu0 0.0
        %277 = vmatpush.msra.mxu0 0.0
        %278 = vmatpush.msra.mxu0 0.0
        %279 = vmatpush.msra.mxu0 0.0
        %280 = vmatpush.msra.mxu0 0.0
        %281 = vmatpush.msra.mxu0 0.0
        %282 = vmatpush.msra.mxu0 0.0
        %283 = vmatpush.msra.mxu0 0.0
        %284 = vmatpush.msra.mxu0 %v263
        %285 = vmatpush.msra.mxu0 %v262
        %286 = vmatpush.msra.mxu0 %v261
        %287 = vmatpush.msra.mxu0 %v260
        %288 = vmatmul.f32.gmra.mxu0 %v270
        %v289 = vpop.f32.mrf.mxu0
        %v290 = vadd.f32 %v266, %v289
        %291 = vdwg.mxu0
        %v292 = vmul.f32 %v290, 0.5
        %v293 = vmul.f32 %v290, 0.70710677
        %v294 = vmul.f32 %v293, %v293
        %v295 = vmin.f32 16.0, %v294
        %v296 = vmul.f32 %v295, 2.1237322e-06
        %v297 = vadd.f32 %v296, 0.00028619796
        %v298 = vmul.f32 %v295, %v297
        %v299 = vadd.f32 %v298, 0.0036580483
        %v300 = vmul.f32 %v295, %v299
        %v301 = vadd.f32 %v300, 0.05243302
        %v302 = vmul.f32 %v295, %v301
        %v303 = vadd.f32 %v302, 0.18741608
        %v304 = vmul.f32 %v295, %v303
        %v305 = vadd.f32 %v304, 1.1283791
        %v306 = vmul.f32 %v293, %v305
        %v307 = vmul.f32 %v295, 3.8918573e-05
        %v308 = vadd.f32 %v307, 0.001143296
        %v309 = vmul.f32 %v295, %v308
        %v310 = vadd.f32 %v309, 0.014752088
        %v311 = vmul.f32 %v295, %v310
        %v312 = vadd.f32 %v311, 0.112945676
        %v313 = vmul.f32 %v295, %v312
        %v314 = vadd.f32 %v313, 0.4994258
        %v315 = vmul.f32 %v295, %v314
        %v316 = vadd.f32 %v315, 1.0
        %v317 = vrcp.pop %v316
        %v318 = vmul.f32 %v316, %v317
        %v319 = vsub.f32 1.0, %v318
        %v320 = vmul.f32 %v317, %v319
        %v321 = vadd.f32 %v317, %v320
        %vm322 = vweird.f32 %v316
        %vm323 = vweird.f32 %v317
        %vm324 = vmor %vm322, %vm323
        %v325 = vsel %vm324, %v317, %v321
        %v326 = vand.u32 2147483647, %v316
        %vm327 = vcmp.eq.f32.partialorder %v326, 8.507059e+37
        %v328 = vand.u32 %v316, 2147483648
        %v329 = vor.u32 1.1754944e-38, %v328
        %v330 = vsel %vm327, %v329, %v325
        %v331 = vmul.f32 %v306, %v330
        %v332 = vmin.f32 %v331, 1.0
        %v333 = vmax.f32 %v332, -1.0
        %v334 = vadd.f32 %v333, 1.0
        %v335 = vmul.f32 %v292, %v334
        %v336 = vsel %vm268, %v335, 0.0
        %337 = vadd.xlane.f32.xlu0 %v336
        %v338 = vpop.xlane.xlu0 %337
        %v339 = vmul.f32 %v338, 0.03125
        %v340 = vsub.f32 %v335, %v339
        %v341 = vmul.f32 %v340, %v340
        %v342 = vsel %vm268, %v341, 0.0
        %343 = vadd.xlane.f32.xlu0 %v342
        %v344 = vpop.xlane.xlu0 %343
        %v345 = vmul.f32 %v344, 0.03125
        %v346 = vadd.f32 %v345, 1e-05
        %v347 = vrsqrt.pop %v346
        %v348 = vmul.f32 %v347, %v346
        %v349 = vmul.f32 %v348, %v347
        %v350 = vmul.f32 0.5, %v349
        %v351 = vsub.f32 1.5, %v350
        %v352 = vmul.f32 %v347, %v351
        %vm353 = vweird.f32 %v346
        %vm354 = vweird.f32 %v347
        %vm355 = vmor %vm353, %vm354
        %v356 = vsel %vm355, %v347, %v352
        %v357 = vmul.f32 %v340, %v356
        %v358 = vld [vmem:[%s3] sm:$0x1]
        %v360 = vperm.slane %v358, 0
        %v362 = vmul.f32 %v357, %v360
        %v363 = vld [vmem:[%s4] sm:$0x1]
        %v365 = vperm.slane %v363, 0
        %v367 = vadd.f32 %v362, %v365
        %368 = vst.msk [vmem:[%s258] sm:$0xff] %vm268, %v367
        %s369 = sand.u32 %s141, 1
        %s370 = scalar_lea.sflag [#allocation4], %s369
        %s371 = sand.u32 %s141, 1
        %s372 = smul.addr %s371, 8
        %s373 = scalar_lea.vmem [#allocation7], %s372
        // Predicated region
        $region49: #{tpu_custom_call.1} parent=39 // pred_check
          %p374 = pneg %p151
        $region50: #{tpu_custom_call.1} parent=39 // pred_check_branch
          %376 = sbr.rel (%p374) target = $region52
        $region51: #{tpu_custom_call.1} parent=39 // pred_region
          %378 = vsyncadd %s370, 0
          %s379 = smul.addr %s23, 8
          %s380 = scalar_lea.hbm %s5, %s379
          %s382 = sshll.u32 %s373, 4
          %s383 = int_to_ptr.vmem [resolvable:$true] %s382
          %s384 = sshll.u32 %s380, 4
          %s385 = int_to_ptr.hbm [resolvable:$true] %s384
          %387 = dma.vmem_to_hbm [thread:$0]  %s383, 128, %s385, %s370
        $region52: #{tpu_custom_call.1} parent=39 // pred_fallthru
          _
      $region40: #{tpu_custom_call.1} parent=5 // pred_fallthru
        _
      %p388 = scmp.le.s32.totalorder 2, %s18
      // Predicated region
      $region53: #{tpu_custom_call.1} parent=5 // pred_check
        %p389 = pneg %p388
      $region54: #{tpu_custom_call.1} parent=5 // pred_check_branch
        %391 = sbr.rel (%p389) target = $region56
      $region55: #{tpu_custom_call.1} parent=5 // pred_region
        %s392 = ssub.s32 %s18, 2
        // Predicated region
        $region57: #{tpu_custom_call.1} parent=55 // pred_check
          %p393 = pneg %p157
        $region58: #{tpu_custom_call.1} parent=55 // pred_check_branch
          %395 = sbr.rel (%p393) target = $region60
        $region59: #{tpu_custom_call.1} parent=55 // pred_region
          %s396 = sand.u32 %s142, 1
          %s397 = scalar_lea.sflag [#allocation4], %s396
          %s398 = sand.u32 %s142, 1
          %s399 = smul.addr %s398, 8
          %s400 = scalar_lea.vmem [#allocation7], %s399
          %402 = dma.done %s397, 128
        $region60: #{tpu_custom_call.1} parent=55 // pred_fallthru
          _
      $region56: #{tpu_custom_call.1} parent=5 // pred_fallthru
        _
    $region6: #{tpu_custom_call.1} parent=1 // loop_footer
      %s22 = sadd.s32 1, %s18
    $region7: #{tpu_custom_call.1} parent=1 // loop_footer_branch
      %17 = sbr.rel target = $region3
    $region8: #{tpu_custom_call.1} parent=1 // loop_exit
      _
    %403 = vsyncpa [#allocation3], 1
    %s404 = scalar_lea.sflag [#allocation3], 1
    %405 = vsyncpa %s404, 1
    %406 = vsyncpa [#allocation6], 1
    %407 = vsyncpa [#allocation4], 1
    %s408 = scalar_lea.sflag [#allocation4], 1
    %409 = vsyncpa %s408, 1

</llo_original>
